<compile_context>
chip_gen: v5e
topology: v5e:2x2
jax: 0.10.0
libtpu: 0.0.40
codegen_flags: <defaults>
</compile_context>

<pallas_src>
import functools

import jax
import jax.numpy as jnp
from jax import lax
from jax.experimental import pallas as pl
from jax.experimental.pallas import tpu as pltpu

# ----------------------------- config ---------------------------------------
BATCH        = 8
SEQ_LEN      = 8
EMB_DIM      = 128
N_LABELS     = 8
OUT_PAD      = 128                       # lane-dense padded output width
VOCAB_SIZE   = 32
N_SEGMENTS   = 3
POS_ROW      = VOCAB_SIZE + N_SEGMENTS   # row index of the pos-0 embedding
PACKED_ROWS  = 40                        # 32 tok + 3 seg + 1 pos, padded to 8k
DROPOUT_PROB = 0.1
TRAINING     = True                      # nn.Dropout active (PyTorch train mode)


# ----------------------------- Pallas kernel --------------------------------
def _fused_kernel(ids_ref, bits_ref, emb_ref,
                  w1_ref, b1_ref, w2p_ref, b2p_ref,
                  o_ref, *, dropout_prob, training, pos_row):
    """CLS embeddings (multi-hot matmul) -> LayerNorm -> Linear -> tanh
       -> dropout -> Linear (lane-dense padded logits)."""
    B = o_ref.shape[0]
    R = emb_ref.shape[0]                                        # packed rows

    # ---- synthetic backbone stand-in: single multi-hot embedding matmul ----
    ids = ids_ref[...]                                          # (B, 2) int32
    row_iota = lax.broadcasted_iota(jnp.int32, (B, R), 1)       # (B, R)
    oh = ((row_iota == ids[:, 0:1]) |                           # token row
          (row_iota == ids[:, 1:2]) |                           # segment row
          (row_iota == pos_row)                                  # pos-0 row
          ).astype(jnp.float32)                                  # (B, R)
    x = jnp.dot(oh, emb_ref[...],
                preferred_element_type=jnp.float32)              # (B, E) f32

    # ---- LayerNorm over the embedding dim (f32) ----
    mu = jnp.mean(x, axis=-1, keepdims=True)
    xc = x - mu
    var = jnp.mean(xc * xc, axis=-1, keepdims=True)
    x = xc * lax.rsqrt(var + 1e-12)

    # ---- pooler Linear (bf16 MXU, f32 accumulate) + tanh ----
    pooled = jnp.tanh(
        jnp.dot(x.astype(jnp.bfloat16), w1_ref[...],
                preferred_element_type=jnp.float32)
        + b1_ref[...]
    )                                                            # (B, E) f32

    # ---- dropout: single uint32 threshold compare + select (training only) ----
    if training and dropout_prob > 0.0:
        keep_prob = 1.0 - dropout_prob
        thresh = jnp.uint32(min(int(keep_prob * (2 ** 32)), 2 ** 32 - 1))
        keep = bits_ref[...] < thresh                            # (B, E) bool
        pooled = jnp.where(keep, pooled * (1.0 / keep_prob), 0.0)

    # ---- classifier Linear into a lane-dense (B, 128) tile ----
    logits = (
        jnp.dot(pooled.astype(jnp.bfloat16), w2p_ref[...],
                preferred_element_type=jnp.float32)
        + b2p_ref[...]
    )                                                            # (B, OUT_PAD)
    o_ref[...] = logits.astype(o_ref.dtype)


def bert_classifier2_forward(token_ids, segment_ids, params, rng_bits,
                             *, dropout_prob, training):
    """Fused BERTClassifier2 forward (synthetic backbone + classifier head)."""
    emb_packed, w1, b1, w2p, b2p = params
    B = token_ids.shape[0]
    R, E = emb_packed.shape
    OP = w2p.shape[1]

    # Only the CLS (position 0) row feeds the head; pack both ids into one
    # (B, 2) array with the segment id pre-offset into the packed table.
    ids = jnp.stack(
        [token_ids[:, 0].astype(jnp.int32),
         segment_ids[:, 0].astype(jnp.int32) + VOCAB_SIZE],
        axis=1)                                                  # (B, 2) int32

    inputs = (ids, rng_bits, emb_packed, w1, b1, w2p, b2p)

    flops = 2 * B * (R * E + E * E + E * OP)
    bytes_accessed = sum(int(a.size) * a.dtype.itemsize for a in inputs) \
        + B * OP * 4

    kernel = functools.partial(_fused_kernel,
                               dropout_prob=dropout_prob,
                               training=training,
                               pos_row=POS_ROW)
    vmem = pl.BlockSpec(memory_space=pltpu.MemorySpace.VMEM)
    logits_padded = pl.pallas_call(
        kernel,
        out_shape=jax.ShapeDtypeStruct((B, OP), jnp.float32),
        in_specs=[vmem] * len(inputs),
        out_specs=vmem,
        cost_estimate=pl.CostEstimate(
            flops=flops,
            transcendentals=B * E,          # tanh
            bytes_accessed=bytes_accessed,
        ),
    )(*inputs)
    return logits_padded[:, :N_LABELS]


# ----------------------------- main ------------------------------------------
if __name__ == "__main__":
    key = jax.random.PRNGKey(0)
    keys = jax.random.split(key, 10)

    # deterministic "parameters"
    tok_emb = 0.02 * jax.random.normal(keys[0], (VOCAB_SIZE, EMB_DIM), jnp.float32)
    seg_emb = 0.02 * jax.random.normal(keys[1], (N_SEGMENTS, EMB_DIM), jnp.float32)
    pos_emb = 0.02 * jax.random.normal(keys[2], (SEQ_LEN, EMB_DIM), jnp.float32)

    # pack token / segment / pos-0 embeddings into a single (40, E) table
    # (rows 0..31 token, 32..34 segment, 35 pos-0, 36..39 zero padding)
    emb_packed = (jnp.zeros((PACKED_ROWS, EMB_DIM), jnp.float32)
                  .at[:VOCAB_SIZE].set(tok_emb)
                  .at[VOCAB_SIZE:VOCAB_SIZE + N_SEGMENTS].set(seg_emb)
                  .at[POS_ROW].set(pos_emb[0]))

    # nn.Linear(emb_dim, emb_dim): weight (out,in) -> stored as (in,out), bf16
    w1 = (0.02 * jax.random.normal(keys[3], (EMB_DIM, EMB_DIM), jnp.float32)
          ).astype(jnp.bfloat16)
    b1 = 0.02 * jax.random.normal(keys[4], (1, EMB_DIM), jnp.float32)
    # nn.Linear(emb_dim, n_labels): weight (out,in) -> stored (in,out),
    # zero-padded to 128 output columns (lane-dense store), bf16
    w2 = 0.02 * jax.random.normal(keys[5], (EMB_DIM, N_LABELS), jnp.float32)
    b2 = 0.02 * jax.random.normal(keys[6], (1, N_LABELS), jnp.float32)
    w2p = jnp.zeros((EMB_DIM, OUT_PAD), jnp.float32).at[:, :N_LABELS].set(w2) \
        .astype(jnp.bfloat16)
    b2p = jnp.zeros((1, OUT_PAD), jnp.float32).at[:, :N_LABELS].set(b2)

    params = (emb_packed, w1, b1, w2p, b2p)

    # deterministic example inputs
    token_ids = jax.random.randint(keys[7], (BATCH, SEQ_LEN), 0, VOCAB_SIZE)
    segment_ids = jax.random.randint(keys[8], (BATCH, SEQ_LEN), 0, N_SEGMENTS)

    # dropout random bits generated outside the kernel (portable across
    # interpret / TPU backends); vary keys[9] per step for fresh masks.
    rng_bits = jax.random.bits(keys[9], (BATCH, EMB_DIM), jnp.uint32)

    fwd = jax.jit(functools.partial(bert_classifier2_forward,
                                    dropout_prob=DROPOUT_PROB,
                                    training=TRAINING))
    logits = fwd(token_ids, segment_ids, params, rng_bits)
    jax.block_until_ready(logits)

    assert logits.shape == (BATCH, N_LABELS), logits.shape
    assert jnp.all(jnp.isfinite(logits)), "non-finite logits"
    print("KERNEL_OK")
</pallas_src>

<mosaic_0001>
module attributes {stable_mosaic.version = 11 : i64} {
  func.func @_fused_kernel(%arg0: memref<8x2xi32, #tpu.memory_space<vmem>>, %arg1: memref<8x128xi32, #tpu.memory_space<vmem>>, %arg2: memref<40x128xf32, #tpu.memory_space<vmem>>, %arg3: memref<128x128xbf16, #tpu.memory_space<vmem>>, %arg4: memref<1x128xf32, #tpu.memory_space<vmem>>, %arg5: memref<128x128xbf16, #tpu.memory_space<vmem>>, %arg6: memref<1x128xf32, #tpu.memory_space<vmem>>, %arg7: memref<8x128xf32, #tpu.memory_space<vmem>>) attributes {dimension_semantics = [], scalar_prefetch = 0 : i64, scratch_operands = 0 : i64, tpu.core_type = #tpu.core_type<tc>} {
    %c0 = arith.constant 0 : index
    %c0_0 = arith.constant 0 : index
    %0 = vector.load %arg0[%c0, %c0_0] : memref<8x2xi32, #tpu.memory_space<vmem>>, vector<8x2xi32>
    %1 = tpu.iota {dimensions = array<i32: 1>} : vector<8x40xi32>
    %2 = vector.extract_strided_slice %0 {offsets = [0, 0], sizes = [8, 1], strides = [1, 1]} : vector<8x2xi32> to vector<8x1xi32>
    %3 = vector.broadcast %2 : vector<8x1xi32> to vector<8x40xi32>
    %4 = arith.cmpi eq, %1, %3 : vector<8x40xi32>
    %5 = vector.extract_strided_slice %0 {offsets = [0, 1], sizes = [8, 1], strides = [1, 1]} : vector<8x2xi32> to vector<8x1xi32>
    %6 = vector.broadcast %5 : vector<8x1xi32> to vector<8x40xi32>
    %7 = arith.cmpi eq, %1, %6 : vector<8x40xi32>
    %8 = arith.ori %4, %7 : vector<8x40xi1>
    %c35_i32 = arith.constant 35 : i32
    %9 = vector.broadcast %c35_i32 : i32 to vector<8x40xi32>
    %10 = arith.cmpi eq, %1, %9 : vector<8x40xi32>
    %11 = arith.ori %8, %10 : vector<8x40xi1>
    %12 = arith.extui %11 : vector<8x40xi1> to vector<8x40xi32>
    %13 = arith.sitofp %12 : vector<8x40xi32> to vector<8x40xf32>
    %c0_1 = arith.constant 0 : index
    %c0_2 = arith.constant 0 : index
    %14 = vector.load %arg2[%c0_1, %c0_2] : memref<40x128xf32, #tpu.memory_space<vmem>>, vector<40x128xf32>
    %cst = arith.constant dense<0.000000e+00> : vector<8x128xf32>
    %15 = tpu.matmul %13, %14, %cst {dimension_numbers = #tpu.dot_dimension_numbers<[1], [0], [0], [1], [0, 0, 1, 1], [], []>} : vector<8x40xf32>, vector<40x128xf32>, vector<8x128xf32> -> vector<8x128xf32>
    %cst_3 = arith.constant dense<0.000000e+00> : vector<8xf32>
    %16 = vector.multi_reduction <add>, %15, %cst_3 [1] : vector<8x128xf32> to vector<8xf32>
    %17 = vector.shape_cast %16 : vector<8xf32> to vector<8x1xf32>
    %cst_4 = arith.constant 1.280000e+02 : f32
    %18 = vector.broadcast %cst_4 : f32 to vector<8x1xf32>
    %19 = arith.divf %17, %18 : vector<8x1xf32>
    %20 = vector.broadcast %19 : vector<8x1xf32> to vector<8x128xf32>
    %21 = arith.subf %15, %20 : vector<8x128xf32>
    %22 = arith.mulf %21, %21 : vector<8x128xf32>
    %cst_5 = arith.constant dense<0.000000e+00> : vector<8xf32>
    %23 = vector.multi_reduction <add>, %22, %cst_5 [1] : vector<8x128xf32> to vector<8xf32>
    %24 = vector.shape_cast %23 : vector<8xf32> to vector<8x1xf32>
    %cst_6 = arith.constant 1.280000e+02 : f32
    %25 = vector.broadcast %cst_6 : f32 to vector<8x1xf32>
    %26 = arith.divf %24, %25 : vector<8x1xf32>
    %cst_7 = arith.constant 9.99999996E-13 : f32
    %27 = vector.broadcast %cst_7 : f32 to vector<8x1xf32>
    %28 = arith.addf %26, %27 : vector<8x1xf32>
    %29 = math.rsqrt %28 : vector<8x1xf32>
    %30 = vector.broadcast %29 : vector<8x1xf32> to vector<8x128xf32>
    %31 = arith.mulf %21, %30 : vector<8x128xf32>
    %32 = arith.truncf %31 : vector<8x128xf32> to vector<8x128xbf16>
    %c0_8 = arith.constant 0 : index
    %c0_9 = arith.constant 0 : index
    %33 = vector.load %arg3[%c0_8, %c0_9] : memref<128x128xbf16, #tpu.memory_space<vmem>>, vector<128x128xbf16>
    %cst_10 = arith.constant dense<0.000000e+00> : vector<8x128xf32>
    %34 = tpu.matmul %32, %33, %cst_10 {dimension_numbers = #tpu.dot_dimension_numbers<[1], [0], [0], [1], [0, 0, 1, 1], [], []>} : vector<8x128xbf16>, vector<128x128xbf16>, vector<8x128xf32> -> vector<8x128xf32>
    %c0_11 = arith.constant 0 : index
    %c0_12 = arith.constant 0 : index
    %35 = vector.load %arg4[%c0_11, %c0_12] : memref<1x128xf32, #tpu.memory_space<vmem>>, vector<1x128xf32>
    %36 = vector.broadcast %35 : vector<1x128xf32> to vector<8x128xf32>
    %37 = arith.addf %34, %36 : vector<8x128xf32>
    %38 = math.tanh %37 : vector<8x128xf32>
    %c0_13 = arith.constant 0 : index
    %c0_14 = arith.constant 0 : index
    %39 = vector.load %arg1[%c0_13, %c0_14] : memref<8x128xi32, #tpu.memory_space<vmem>>, vector<8x128xi32>
    %c-429496730_i32 = arith.constant -429496730 : i32
    %40 = vector.broadcast %c-429496730_i32 : i32 to vector<8x128xi32>
    %41 = arith.cmpi ult, %39, %40 : vector<8x128xi32>
    %cst_15 = arith.constant 1.11111116 : f32
    %42 = vector.broadcast %cst_15 : f32 to vector<8x128xf32>
    %43 = arith.mulf %38, %42 : vector<8x128xf32>
    %cst_16 = arith.constant 0.000000e+00 : f32
    %44 = vector.broadcast %cst_16 : f32 to vector<8x128xf32>
    %45 = arith.select %41, %43, %44 : vector<8x128xi1>, vector<8x128xf32>
    %46 = arith.truncf %45 : vector<8x128xf32> to vector<8x128xbf16>
    %c0_17 = arith.constant 0 : index
    %c0_18 = arith.constant 0 : index
    %47 = vector.load %arg5[%c0_17, %c0_18] : memref<128x128xbf16, #tpu.memory_space<vmem>>, vector<128x128xbf16>
    %cst_19 = arith.constant dense<0.000000e+00> : vector<8x128xf32>
    %48 = tpu.matmul %46, %47, %cst_19 {dimension_numbers = #tpu.dot_dimension_numbers<[1], [0], [0], [1], [0, 0, 1, 1], [], []>} : vector<8x128xbf16>, vector<128x128xbf16>, vector<8x128xf32> -> vector<8x128xf32>
    %c0_20 = arith.constant 0 : index
    %c0_21 = arith.constant 0 : index
    %49 = vector.load %arg6[%c0_20, %c0_21] : memref<1x128xf32, #tpu.memory_space<vmem>>, vector<1x128xf32>
    %50 = vector.broadcast %49 : vector<1x128xf32> to vector<8x128xf32>
    %51 = arith.addf %48, %50 : vector<8x128xf32>
    %c0_22 = arith.constant 0 : index
    %c0_23 = arith.constant 0 : index
    %52 = vector.load %arg7[%c0_22, %c0_23] : memref<8x128xf32, #tpu.memory_space<vmem>>, vector<8x128xf32>
    tpu.vector_store %arg7[%c0_22, %c0_23], %51 {strides = array<i32>} : memref<8x128xf32, #tpu.memory_space<vmem>>, vector<8x128xf32>,
    return
  }
}

</mosaic_0001>

<llo_original>
// kernel: bert_classifier2_forward.1
$region0: #{bert_classifier2_forward.1}
  #allocation0 [shape = 'u32[]', space=smem, size = 0x4, offset = 0x4, fixed_abs, tag = 'smem constant byte address 0x4 - core index']
  #allocation1 [shape = 'u32[72,128]{1,0:T(1,128)}', space=vmem, size = 0x9000, scoped, tag = 'internal scratch']
  %s0 = inlined_call_operand.vmem [shape: s32[8,2], index: 0, kind: input, shape index: {}]
  %s1 = inlined_call_operand.vmem [shape: u32[8,128], index: 1, kind: input, shape index: {}]
  %s2 = inlined_call_operand.hbm [shape: f32[40,128], index: 2, kind: input, shape index: {}]
  %s3 = inlined_call_operand.hbm [shape: bf16[128,128], index: 3, kind: input, shape index: {}]
  %s4 = inlined_call_operand.vmem [shape: f32[1,128], index: 4, kind: input, shape index: {}]
  %s5 = inlined_call_operand.hbm [shape: bf16[128,128], index: 5, kind: input, shape index: {}]
  %s6 = inlined_call_operand.vmem [shape: f32[1,128], index: 6, kind: input, shape index: {}]
  %s7 = inlined_call_operand.hbm [shape: f32[8,128], index: 7, kind: output, shape index: {}]
  %s8 = sld [smem:[#allocation0]]
  $region50: #{bert_classifier2_forward.1} parent=0
    _
  %s10 = ssub.s32 1, %s8
  %s11 = scalar_select 0, %s10, %s8
  $region1: #{bert_classifier2_forward.1} parent=0
    #allocation2 [shape = 'u8[20480]{0}', space=vmem, size = 0x5000, scoped, tag = 'input window, operand 2, single buffered']
    #allocation3 [shape = 's32[1]{0}', space=sflag, size = 0x4, scoped, tag = 'scoped memory for bert_classifier2_forward.1']
    #allocation4 [shape = 's32[1]{0}', space=sflag, size = 0x4, scoped, tag = 'scoped memory for bert_classifier2_forward.1']
    #allocation5 [shape = 'u8[32768]{0}', space=vmem, size = 0x8000, scoped, tag = 'input window, operand 3, single buffered']
    #allocation6 [shape = 's32[1]{0}', space=sflag, size = 0x4, scoped, tag = 'scoped memory for bert_classifier2_forward.1']
    #allocation7 [shape = 'u8[32768]{0}', space=vmem, size = 0x8000, scoped, tag = 'input window, operand 5, single buffered']
    #allocation8 [shape = 'u8[4096]{0}', space=vmem, size = 0x1000, scoped, tag = 'output window, operand 0, single buffered']
    %12 = vsyncpa [#allocation3], 0
    %13 = vsyncpa [#allocation6], 0
    %14 = vsyncpa [#allocation4], 0
    // Predicated region
    $region2: #{bert_classifier2_forward.1} parent=1 // pred_check
      _
    $region3: #{bert_classifier2_forward.1} parent=1 // pred_check_branch
      %16 = sbr.rel (0) target = $region5
    $region4: #{bert_classifier2_forward.1} parent=1 // pred_region
      _
    $region5: #{bert_classifier2_forward.1} parent=1 // pred_fallthru
      _
    // Predicated region
    $region6: #{bert_classifier2_forward.1} parent=1 // pred_check
      _
    $region7: #{bert_classifier2_forward.1} parent=1 // pred_check_branch
      %18 = sbr.rel (0) target = $region9
    $region8: #{bert_classifier2_forward.1} parent=1 // pred_region
      _
    $region9: #{bert_classifier2_forward.1} parent=1 // pred_fallthru
      _
    // Predicated region
    $region10: #{bert_classifier2_forward.1} parent=1 // pred_check
      _
    $region11: #{bert_classifier2_forward.1} parent=1 // pred_check_branch
      %20 = sbr.rel (0) target = $region13
    $region12: #{bert_classifier2_forward.1} parent=1 // pred_region
      %22 = vsyncadd [#allocation3], 0
      %s23 = sshll.u32 %s2, 4
      %s24 = int_to_ptr.hbm [resolvable:$true] %s23
      %s25 = sshll.u32 [#allocation2], 4
      %s26 = int_to_ptr.vmem [resolvable:$true] %s25
      %31 = dma.hbm_to_vmem [thread:$0]  %s24, 640, %s26, [#allocation3], 128, 128, 8
    $region13: #{bert_classifier2_forward.1} parent=1 // pred_fallthru
      _
    // Predicated region
    $region14: #{bert_classifier2_forward.1} parent=1 // pred_check
      _
    $region15: #{bert_classifier2_forward.1} parent=1 // pred_check_branch
      %33 = sbr.rel (0) target = $region17
    $region16: #{bert_classifier2_forward.1} parent=1 // pred_region
      %35 = vsyncadd [#allocation6], 0
      %s36 = sshll.u32 %s3, 4
      %s37 = int_to_ptr.hbm [resolvable:$true] %s36
      %s38 = sshll.u32 [#allocation5], 4
      %s39 = int_to_ptr.vmem [resolvable:$true] %s38
      %44 = dma.hbm_to_vmem [thread:$0]  %s37, 1024, %s39, [#allocation6], 64, 64, 4
    $region17: #{bert_classifier2_forward.1} parent=1 // pred_fallthru
      _
    // Predicated region
    $region18: #{bert_classifier2_forward.1} parent=1 // pred_check
      _
    $region19: #{bert_classifier2_forward.1} parent=1 // pred_check_branch
      %46 = sbr.rel (0) target = $region21
    $region20: #{bert_classifier2_forward.1} parent=1 // pred_region
      _
    $region21: #{bert_classifier2_forward.1} parent=1 // pred_fallthru
      _
    // Predicated region
    $region22: #{bert_classifier2_forward.1} parent=1 // pred_check
      _
    $region23: #{bert_classifier2_forward.1} parent=1 // pred_check_branch
      %48 = sbr.rel (0) target = $region25
    $region24: #{bert_classifier2_forward.1} parent=1 // pred_region
      %50 = vsyncadd [#allocation6], 0
      %s51 = sshll.u32 %s5, 4
      %s52 = int_to_ptr.hbm [resolvable:$true] %s51
      %s53 = sshll.u32 [#allocation7], 4
      %s54 = int_to_ptr.vmem [resolvable:$true] %s53
      %59 = dma.hbm_to_vmem [thread:$0]  %s52, 1024, %s54, [#allocation6], 64, 64, 4
    $region25: #{bert_classifier2_forward.1} parent=1 // pred_fallthru
      _
    // Predicated region
    $region26: #{bert_classifier2_forward.1} parent=1 // pred_check
      _
    $region27: #{bert_classifier2_forward.1} parent=1 // pred_check_branch
      %61 = sbr.rel (0) target = $region29
    $region28: #{bert_classifier2_forward.1} parent=1 // pred_region
      _
    $region29: #{bert_classifier2_forward.1} parent=1 // pred_fallthru
      _
    // Predicated region
    $region30: #{bert_classifier2_forward.1} parent=1 // pred_check
      _
    $region31: #{bert_classifier2_forward.1} parent=1 // pred_check_branch
      %63 = sbr.rel (0) target = $region33
    $region32: #{bert_classifier2_forward.1} parent=1 // pred_region
      %65 = dma.done [#allocation3], 640
    $region33: #{bert_classifier2_forward.1} parent=1 // pred_fallthru
      _
    // Predicated region
    $region34: #{bert_classifier2_forward.1} parent=1 // pred_check
      _
    $region35: #{bert_classifier2_forward.1} parent=1 // pred_check_branch
      %67 = sbr.rel (0) target = $region37
    $region36: #{bert_classifier2_forward.1} parent=1 // pred_region
      %69 = dma.done [#allocation6], 1024
    $region37: #{bert_classifier2_forward.1} parent=1 // pred_fallthru
      _
    // Predicated region
    $region38: #{bert_classifier2_forward.1} parent=1 // pred_check
      _
    $region39: #{bert_classifier2_forward.1} parent=1 // pred_check_branch
      %71 = sbr.rel (0) target = $region41
    $region40: #{bert_classifier2_forward.1} parent=1 // pred_region
      %73 = dma.done [#allocation6], 1024
    $region41: #{bert_classifier2_forward.1} parent=1 // pred_fallthru
      _
    %v74 = vld [vmem:[%s0] sm:$0xff]
    %v75 = vlaneseq
    %v76 = vand.u32 %v75, 127
    %77 = vset.pattern.permute.xlu0 0
    %78 = vperm.xlu0 %77, %v74
    %v79 = vpop.permute.xlu0 %78
    %vm80 = vcmp.eq.s32.totalorder %v76, %v79
    %81 = vset.pattern.permute.xlu0 1
    %82 = vperm.xlu0 %81, %v74
    %v83 = vpop.permute.xlu0 %82
    %vm84 = vcmp.eq.s32.totalorder %v76, %v83
    %vm85 = vmor %vm80, %vm84
    %vm86 = vcmp.eq.s32.totalorder %v76, 35
    %vm87 = vmor %vm85, %vm86
    %v88 = vsel %vm87, 1, 0
    %v89 = vcvt.s32.f32 %v88
    %v90 = vld [vmem:[#allocation2] sm:$0xff]
    %v91 = vld [vmem:[#allocation2 + $0x8] sm:$0xff]
    %v92 = vld [vmem:[#allocation2 + $0x10] sm:$0xff]
    %v93 = vld [vmem:[#allocation2 + $0x18] sm:$0xff]
    %v94 = vld [vmem:[#allocation2 + $0x20] sm:$0xff]
    %vm95 = vcmask 326656
    %v97 = vsel %vm95, %v89, 0
    %99 = vmatpush.msra.mxu0 0.0
    %100 = vmatpush.msra.mxu0 0.0
    %101 = vmatpush.msra.mxu0 0.0
    %102 = vmatpush.msra.mxu0 0.0
    %103 = vmatpush.msra.mxu0 0.0
    %104 = vmatpush.msra.mxu0 0.0
    %105 = vmatpush.msra.mxu0 0.0
    %106 = vmatpush.msra.mxu0 0.0
    %107 = vmatpush.msra.mxu0 0.0
    %108 = vmatpush.msra.mxu0 0.0
    %109 = vmatpush.msra.mxu0 0.0
    %110 = vmatpush.msra.mxu0 %v94
    %111 = vmatpush.msra.mxu0 %v93
    %112 = vmatpush.msra.mxu0 %v92
    %113 = vmatpush.msra.mxu0 %v91
    %114 = vmatpush.msra.mxu0 %v90
    %115 = vmatmul.f32.gmra.mxu0 %v97
    %v116 = vpop.f32.mrf.mxu0
    %v117 = vadd.f32 0.0, %v116
    %118 = vdwg.mxu0
    %119 = vadd.xlane.f32.xlu0 %v117
    %v120 = vpop.xlane.xlu0 %119
    %v121 = vrcp.pop 128.0
    %v122 = vmul.f32 128.0, %v121
    %v123 = vsub.f32 1.0, %v122
    %v124 = vmul.f32 %v121, %v123
    %v125 = vadd.f32 %v121, %v124
    %vm126 = vweird.f32 %v121
    %v127 = vsel %vm126, %v121, %v125
    %v128 = vmul.f32 %v120, %v127
    %v129 = vsub.f32 %v117, %v128
    %v130 = vmul.f32 %v129, %v129
    %131 = vadd.xlane.f32.xlu0 %v130
    %v132 = vpop.xlane.xlu0 %131
    %v133 = vmul.f32 %v132, %v127
    %v134 = vadd.f32 %v133, 1e-12
    %v135 = vrsqrt.pop %v134
    %v136 = vmul.f32 %v135, %v134
    %v137 = vmul.f32 %v136, %v135
    %v138 = vmul.f32 0.5, %v137
    %v139 = vsub.f32 1.5, %v138
    %v140 = vmul.f32 %v135, %v139
    %vm141 = vweird.f32 %v134
    %vm142 = vweird.f32 %v135
    %vm143 = vmor %vm141, %vm142
    %v144 = vsel %vm143, %v135, %v140
    %v145 = vmul.f32 %v129, %v144
    %v146 = vpack.c.bf16 %v145, %v145
    %v147 = vld [vmem:[#allocation5] sm:$0xf]
    %v148 = vld [vmem:[#allocation5 + $0x4] sm:$0xf]
    %v149 = vld [vmem:[#allocation5 + $0x8] sm:$0xf]
    %v150 = vld [vmem:[#allocation5 + $0xc] sm:$0xf]
    %v151 = vld [vmem:[#allocation5 + $0x10] sm:$0xf]
    %v152 = vld [vmem:[#allocation5 + $0x14] sm:$0xf]
    %v153 = vld [vmem:[#allocation5 + $0x18] sm:$0xf]
    %v154 = vld [vmem:[#allocation5 + $0x1c] sm:$0xf]
    %v155 = vld [vmem:[#allocation5 + $0x20] sm:$0xf]
    %v156 = vld [vmem:[#allocation5 + $0x24] sm:$0xf]
    %v157 = vld [vmem:[#allocation5 + $0x28] sm:$0xf]
    %v158 = vld [vmem:[#allocation5 + $0x2c] sm:$0xf]
    %v159 = vld [vmem:[#allocation5 + $0x30] sm:$0xf]
    %v160 = vld [vmem:[#allocation5 + $0x34] sm:$0xf]
    %v161 = vld [vmem:[#allocation5 + $0x38] sm:$0xf]
    %v162 = vld [vmem:[#allocation5 + $0x3c] sm:$0xf]
    %v163 = vld [vmem:[%s4] sm:$0x1]
    %v165 = vperm.slane %v163, 0
    %v183 = vunpack.c.l.b16 %v147
    %v184 = vunpack.c.l.b16 %v148
    %v185 = vunpack.c.l.b16 %v149
    %v186 = vunpack.c.l.b16 %v150
    %v187 = vunpack.c.l.b16 %v151
    %v188 = vunpack.c.l.b16 %v152
    %v189 = vunpack.c.l.b16 %v153
    %v190 = vunpack.c.l.b16 %v154
    %v191 = vunpack.c.l.b16 %v155
    %v192 = vunpack.c.l.b16 %v156
    %v193 = vunpack.c.l.b16 %v157
    %v194 = vunpack.c.l.b16 %v158
    %v195 = vunpack.c.l.b16 %v159
    %v196 = vunpack.c.l.b16 %v160
    %v197 = vunpack.c.l.b16 %v161
    %v198 = vunpack.c.l.b16 %v162
    %v199 = vpack.c.b16 %v184, %v183
    %v200 = vpack.c.b16 %v186, %v185
    %v201 = vpack.c.b16 %v188, %v187
    %v202 = vpack.c.b16 %v190, %v189
    %v203 = vpack.c.b16 %v192, %v191
    %v204 = vpack.c.b16 %v194, %v193
    %v205 = vpack.c.b16 %v196, %v195
    %v206 = vpack.c.b16 %v198, %v197
    %215 = vmatpush.bf16.msra.mxu0 %v206
    %216 = vmatpush.bf16.msra.mxu0 %v205
    %217 = vmatpush.bf16.msra.mxu0 %v204
    %218 = vmatpush.bf16.msra.mxu0 %v203
    %219 = vmatpush.bf16.msra.mxu0 %v202
    %220 = vmatpush.bf16.msra.mxu0 %v201
    %221 = vmatpush.bf16.msra.mxu0 %v200
    %222 = vmatpush.bf16.msra.mxu0 %v199
    %223 = vmatmul.bf16.gmra.mxu0 %v146
    %v224 = vpop.f32.mrf.mxu0
    %v225 = vadd.f32 %v165, %v224
    %v226 = vpop.f32.mrf.mxu0
    %227 = vdwg.mxu0
    %v228 = vtanh.pop %v225
    %v229 = vld [vmem:[%s1] sm:$0xff]
    %v230 = vadd.s32 %v229, 2147483648
    %vm232 = vcmp.lt.s32.totalorder %v230, 1717986918
    %v233 = vmul.f32 %v228, 1.1111112
    %v234 = vsel %vm232, %v233, 0.0
    %v235 = vpack.c.bf16 %v234, %v234
    %v236 = vld [vmem:[#allocation7] sm:$0xf]
    %v237 = vld [vmem:[#allocation7 + $0x4] sm:$0xf]
    %v238 = vld [vmem:[#allocation7 + $0x8] sm:$0xf]
    %v239 = vld [vmem:[#allocation7 + $0xc] sm:$0xf]
    %v240 = vld [vmem:[#allocation7 + $0x10] sm:$0xf]
    %v241 = vld [vmem:[#allocation7 + $0x14] sm:$0xf]
    %v242 = vld [vmem:[#allocation7 + $0x18] sm:$0xf]
    %v243 = vld [vmem:[#allocation7 + $0x1c] sm:$0xf]
    %v244 = vld [vmem:[#allocation7 + $0x20] sm:$0xf]
    %v245 = vld [vmem:[#allocation7 + $0x24] sm:$0xf]
    %v246 = vld [vmem:[#allocation7 + $0x28] sm:$0xf]
    %v247 = vld [vmem:[#allocation7 + $0x2c] sm:$0xf]
    %v248 = vld [vmem:[#allocation7 + $0x30] sm:$0xf]
    %v249 = vld [vmem:[#allocation7 + $0x34] sm:$0xf]
    %v250 = vld [vmem:[#allocation7 + $0x38] sm:$0xf]
    %v251 = vld [vmem:[#allocation7 + $0x3c] sm:$0xf]
    %v252 = vld [vmem:[%s6] sm:$0x1]
    %v254 = vperm.slane %v252, 0
    %v272 = vunpack.c.l.b16 %v236
    %v273 = vunpack.c.l.b16 %v237
    %v274 = vunpack.c.l.b16 %v238
    %v275 = vunpack.c.l.b16 %v239
    %v276 = vunpack.c.l.b16 %v240
    %v277 = vunpack.c.l.b16 %v241
    %v278 = vunpack.c.l.b16 %v242
    %v279 = vunpack.c.l.b16 %v243
    %v280 = vunpack.c.l.b16 %v244
    %v281 = vunpack.c.l.b16 %v245
    %v282 = vunpack.c.l.b16 %v246
    %v283 = vunpack.c.l.b16 %v247
    %v284 = vunpack.c.l.b16 %v248
    %v285 = vunpack.c.l.b16 %v249
    %v286 = vunpack.c.l.b16 %v250
    %v287 = vunpack.c.l.b16 %v251
    %v288 = vpack.c.b16 %v273, %v272
    %v289 = vpack.c.b16 %v275, %v274
    %v290 = vpack.c.b16 %v277, %v276
    %v291 = vpack.c.b16 %v279, %v278
    %v292 = vpack.c.b16 %v281, %v280
    %v293 = vpack.c.b16 %v283, %v282
    %v294 = vpack.c.b16 %v285, %v284
    %v295 = vpack.c.b16 %v287, %v286
    %304 = vmatpush.bf16.msra.mxu0 %v295
    %305 = vmatpush.bf16.msra.mxu0 %v294
    %306 = vmatpush.bf16.msra.mxu0 %v293
    %307 = vmatpush.bf16.msra.mxu0 %v292
    %308 = vmatpush.bf16.msra.mxu0 %v291
    %309 = vmatpush.bf16.msra.mxu0 %v290
    %310 = vmatpush.bf16.msra.mxu0 %v289
    %311 = vmatpush.bf16.msra.mxu0 %v288
    %312 = vmatmul.bf16.gmra.mxu0 %v235
    %v313 = vpop.f32.mrf.mxu0
    %v314 = vadd.f32 %v254, %v313
    %v315 = vpop.f32.mrf.mxu0
    %316 = vdwg.mxu0
    %317 = vst [vmem:[#allocation8] sm:$0xff] %v314
    // Predicated region
    $region42: #{bert_classifier2_forward.1} parent=1 // pred_check
      _
    $region43: #{bert_classifier2_forward.1} parent=1 // pred_check_branch
      %319 = sbr.rel (0) target = $region45
    $region44: #{bert_classifier2_forward.1} parent=1 // pred_region
      %321 = vsyncadd [#allocation4], 0
      %s323 = sshll.u32 [#allocation8], 4
      %s324 = int_to_ptr.vmem [resolvable:$true] %s323
      %s325 = sshll.u32 %s7, 4
      %s326 = int_to_ptr.hbm [resolvable:$true] %s325
      %328 = dma.vmem_to_hbm [thread:$0]  %s324, 128, %s326, [#allocation4]
    $region45: #{bert_classifier2_forward.1} parent=1 // pred_fallthru
      _
    // Predicated region
    $region46: #{bert_classifier2_forward.1} parent=1 // pred_check
      _
    $region47: #{bert_classifier2_forward.1} parent=1 // pred_check_branch
      %330 = sbr.rel (0) target = $region49
    $region48: #{bert_classifier2_forward.1} parent=1 // pred_region
      %332 = dma.done [#allocation4], 128
    $region49: #{bert_classifier2_forward.1} parent=1 // pred_fallthru
      _
    %333 = vsyncpa [#allocation3], 1
    %334 = vsyncpa [#allocation6], 1
    %335 = vsyncpa [#allocation4], 1

</llo_original>
